<compile_context>
chip_gen: v6e
topology: v6e:2x2x1
jax: 0.10.0
libtpu: 0.0.40
codegen_flags: <defaults>
</compile_context>

<pallas_src>
import jax
import jax.numpy as jnp
from jax import lax
from jax.experimental import pallas as pl
from jax.experimental.pallas import tpu as pltpu


# ---------------------------------------------------------------------------
# Pass 1: convolution (banded matmuls, Nb images stacked into M) + BN stats
# ---------------------------------------------------------------------------
def conv_stats_kernel(x_ref, w_ref, conv_ref, stats_ref, xpad_ref):
    """One block of Nb batch images per grid step.

    x_ref:     (Nb, H, W*Cin)          bf16  unpadded activations, lanes = W*Cin
    w_ref:     (KH, W*Cin, Cout*Wo)    bf16  banded conv weight (W-pad folded in)
    conv_ref:  (Nb, Ho, Cout*Wo)       bf16  conv output, lane-dense (c-major)
    stats_ref: (1, 2, Cout*Wo)         f32   lane-dense partial [sum, sum_sq]
    xpad_ref:  (Nb*(H+2*pad), W*Cin)   bf16  VMEM scratch: H-padded image stack
    """
    Nb, H, WCin = x_ref.shape
    KH = w_ref.shape[0]
    Ho, WoC = conv_ref.shape[1], conv_ref.shape[2]
    Hp = xpad_ref.shape[0] // Nb                    # padded image height (static)
    pad = (Hp - H) // 2                             # symmetric H padding (static)

    # H-padding in the persistent scratch: one aligned full-tile zero store,
    # then copy each image's rows into its interior (pad rows stay zero).
    # Every row is rewritten every step, so this is safe under "parallel".
    xpad_ref[...] = jnp.zeros(xpad_ref.shape, x_ref.dtype)
    for i in range(Nb):                             # tiny static unroll
        xpad_ref[pl.ds(i * Hp + pad, H), :] = x_ref[i]

    # Conv as KH banded matmuls with all Nb images stacked into M:
    #   acc[r] = sum_kh xpad[r + kh] @ w[kh]
    # Rows r in [i*Hp, i*Hp + Ho) are image i's outputs; the (KH-1) rows between
    # images are discarded (a ~(KH-1)/Hp MXU-row waste in exchange for one
    # large-M matmul per tap instead of Nb small ones).
    Mf = Nb * Hp - (KH - 1)
    acc = jnp.zeros((Mf, WoC), jnp.float32)
    for kh in range(KH):                            # tiny static unroll
        acc = acc + jnp.dot(xpad_ref[pl.ds(kh, Mf), :], w_ref[kh],
                            preferred_element_type=jnp.float32)
    # TODO(synk): on v6e/v7x, concatenate the KH shifted views along the lane
    # axis and use a single K=KH*W*Cin matmul now that M is batched up.

    # Per-image extraction, bf16 downcast, and lane-dense f32 partial stats
    # (stats come from the f32 accumulator, before the bf16 rounding; the tiny
    # Wo->Cout fold is done in the wrapper, not in the hot loop).
    s1 = jnp.zeros((1, WoC), jnp.float32)
    s2 = jnp.zeros((1, WoC), jnp.float32)
    for i in range(Nb):
        blk = acc[i * Hp:i * Hp + Ho]               # (Ho, Cout*Wo) f32
        conv_ref[i] = blk.astype(conv_ref.dtype)    # dense lane-width-128 store
        s1 = s1 + jnp.sum(blk, axis=0, keepdims=True)
        s2 = s2 + jnp.sum(blk * blk, axis=0, keepdims=True)
    stats_ref[0] = jnp.concatenate([s1, s2], axis=0)


# ---------------------------------------------------------------------------
# Pass 2: fused BN affine + ReLU, NCHW emitted directly from the kernel
# ---------------------------------------------------------------------------
def bn_relu_nchw_kernel(conv_ref, scale_ref, shift_ref, o_ref):
    """conv_ref:  (Nb, Ho, Cout*Wo) bf16   lane order (c, w)
       scale_ref: (1, Cout*Wo)      f32    gamma * rsqrt(var+eps), c-major lanes
       shift_ref: (1, Cout*Wo)      f32    beta - mean*scale,      c-major lanes
       o_ref:     (Nb, Cout, Ho, Wo) f32   NCHW output block
    """
    Nb = conv_ref.shape[0]
    Cout, Wo = o_ref.shape[1], o_ref.shape[3]
    # Epilogue math in f32 (v5e has no bf16 VPU support).
    y = conv_ref[...].astype(jnp.float32) * scale_ref[...] + shift_ref[...]
    y = jnp.maximum(y, 0.0)
    # Lane order is (c, w): channel c owns the contiguous lane band
    # [c*Wo, (c+1)*Wo), so NCHW planes are static lane slices -- no separate
    # full-size XLA transpose pass over the output.
    for i in range(Nb):
        for c in range(Cout):
            o_ref[i, c] = y[i, :, c * Wo:(c + 1) * Wo].astype(o_ref.dtype)


# ---------------------------------------------------------------------------
# Wrapper helpers
# ---------------------------------------------------------------------------
def _banded_weight(w_oihw, W, Wo, padding):
    """(Cout,Cin,KH,KW) -> (KH, W*Cin, Cout*Wo) banded matrix; W-direction zero
    padding is absorbed (taps that would read the pad are simply omitted).
    Output lane order is c-major / w-minor so NCHW planes are lane bands."""
    Cout, Cin, KH, KW = w_oihw.shape
    wt = jnp.transpose(w_oihw, (2, 3, 1, 0))                  # (KH, KW, Cin, Cout)
    kw = jnp.arange(KW)[:, None, None]
    w_in = jnp.arange(W)[None, :, None]
    w_out = jnp.arange(Wo)[None, None, :]
    ind = (w_in == w_out + kw - padding).astype(wt.dtype)     # (KW, W, Wo)
    band = jnp.einsum("kpw,hkio->hpiow", ind, wt)             # (KH, W, Cin, Cout, Wo)
    return band.reshape(KH, W * Cin, Cout * Wo)


def _largest_divisor_leq(n, cap):
    cap = max(1, min(n, int(cap)))
    for d in range(cap, 0, -1):
        if n % d == 0:
            return d
    return 1


def _pick_images_per_step(n, ho, vmem_cap, target_m=256):
    """Nb so M = Nb*Ho approaches the MXU depth, within a VMEM-budget cap; when
    possible keep >= 2 grid steps (megacore on v7x) while M stays >= 128."""
    cap = min(max(1, target_m // max(ho, 1)), max(1, vmem_cap))
    best = _largest_divisor_leq(n, cap)
    for d in range(best, 0, -1):
        if n % d == 0 and d <= cap and n // d >= 2 and d * ho >= 128:
            return d
    return best


def _vmem_limit_bytes():
    """Per-generation scoped-VMEM ceiling: ~3/4 of physical (96 MiB on v5e/v6e's
    128 MiB, 48 MiB on v7x's 64 MiB), with a conservative fallback."""
    try:
        phys = pltpu.get_tpu_info().vmem_capacity_bytes
        return int(min(phys * 3 // 4, 112 * 1024 * 1024))
    except Exception:
        return 32 * 1024 * 1024


# ---------------------------------------------------------------------------
# Forward pass matching PyTorch BatchNormConv2d (stride=1, train-mode BN)
# ---------------------------------------------------------------------------
def batch_norm_conv2d(x_nchw, w_oihw, bias, gamma, beta, padding=1, eps=1e-3):
    # NOTE: a per-channel conv bias is exactly cancelled by the train-mode BN
    # mean subtraction, so it is dropped (zero numerical change). Only valid
    # because train-mode BN immediately follows the conv.
    del bias
    N, Cin, H, W = x_nchw.shape
    Cout, _, KH, KW = w_oihw.shape
    Ho = H + 2 * padding - KH + 1
    Wo = W + 2 * padding - KW + 1
    Hp = H + 2 * padding
    WCin = W * Cin
    WoC = Cout * Wo

    # NCHW -> NHWC -> (N, H, W*Cin). No padded HBM copy of x: W-pad lives in the
    # banded weight, H-pad lives in a VMEM scratch.
    x_flat = jnp.transpose(x_nchw, (0, 2, 3, 1)).reshape(N, H, WCin).astype(jnp.bfloat16)
    w_band = _banded_weight(w_oihw.astype(jnp.float32), W, Wo, padding).astype(jnp.bfloat16)
    # TODO(synk): at realistic shapes (large W/Cin/Cout) the band needs a Wo-tile
    # grid axis (or plain im2col once Cout >= 128) and a single-buffered weight
    # (pl.Buffered(1)) to stay within v7x's 64 MiB VMEM.

    cparams = pltpu.CompilerParams(
        dimension_semantics=("parallel",),          # megacore across the batch (v7x)
        vmem_limit_bytes=_vmem_limit_bytes())

    # ---- pass 1: conv + per-block BN partial sums ---------------------------
    bytes_per_img_1 = 2 * 2 * (H * WCin + Ho * WoC) + 2 * Hp * WCin  # dbl-buffered io + scratch (bf16)
    nb1 = _pick_images_per_step(N, Ho, (8 << 20) // max(bytes_per_img_1, 1))
    g1 = N // nb1

    conv_bf16, stats = pl.pallas_call(
        conv_stats_kernel,
        out_shape=(jax.ShapeDtypeStruct((N, Ho, WoC), jnp.bfloat16),   # bf16 intermediate
                   jax.ShapeDtypeStruct((g1, 2, WoC), jnp.float32)),
        grid=(g1,),
        in_specs=[pl.BlockSpec((nb1, H, WCin), lambda g: (g, 0, 0)),
                  pl.BlockSpec((KH, WCin, WoC), lambda g: (0, 0, 0))],
        out_specs=(pl.BlockSpec((nb1, Ho, WoC), lambda g: (g, 0, 0)),
                   pl.BlockSpec((1, 2, WoC), lambda g: (g, 0, 0))),
        scratch_shapes=[pltpu.VMEM((nb1 * Hp, WCin), jnp.bfloat16)],
        compiler_params=cparams,
    )(x_flat, w_band)

    # ---- batch-global BN stats -> one per-channel affine (tiny, done in XLA) --
    # Single-pass E[x^2]-E[x]^2 from f32 sums, guarded with max(.,0).
    # TODO(synk): mean-shifted sums (or two-pass) if |mean| >> std ever matters.
    sums = jnp.sum(stats, axis=0).reshape(2, Cout, Wo).sum(axis=-1)   # (2, Cout)
    count = jnp.float32(N * Ho * Wo)
    mean = sums[0] / count
    var = jnp.maximum(sums[1] / count - mean * mean, 0.0)
    scale = gamma.astype(jnp.float32) * lax.rsqrt(var + eps)
    shift = beta.astype(jnp.float32) - mean * scale
    scale_row = jnp.repeat(scale, Wo)[None, :]      # (1, Cout*Wo): lane order (c, w)
    shift_row = jnp.repeat(shift, Wo)[None, :]

    # ---- pass 2: fused BN affine + ReLU, NCHW emitted directly --------------
    bytes_per_img_2 = 2 * (Ho * WoC * 2 + Cout * Ho * Wo * 4)
    nb2 = _largest_divisor_leq(N, max(1, (16 << 20) // max(bytes_per_img_2, 1)))
    g2 = N // nb2

    out = pl.pallas_call(
        bn_relu_nchw_kernel,
        out_shape=jax.ShapeDtypeStruct((N, Cout, Ho, Wo), jnp.float32),
        grid=(g2,),
        in_specs=[pl.BlockSpec((nb2, Ho, WoC), lambda g: (g, 0, 0)),
                  pl.BlockSpec((1, WoC), lambda g: (0, 0)),
                  pl.BlockSpec((1, WoC), lambda g: (0, 0))],
        out_specs=pl.BlockSpec((nb2, Cout, Ho, Wo), lambda g: (g, 0, 0, 0)),
        compiler_params=cparams,
    )(conv_bf16, scale_row, shift_row)
    return out


# ---------------------------------------------------------------------------
# Pure-JAX reference (f32, HIGHEST precision) for correctness checking
# ---------------------------------------------------------------------------
def _reference(x_nchw, w_oihw, bias, gamma, beta, padding=1, eps=1e-3):
    conv = lax.conv_general_dilated(
        x_nchw.astype(jnp.float32), w_oihw.astype(jnp.float32),
        window_strides=(1, 1), padding=[(padding, padding), (padding, padding)],
        dimension_numbers=("NCHW", "OIHW", "NCHW"),
        precision=lax.Precision.HIGHEST,
    ) + bias.reshape(1, -1, 1, 1)
    mean = jnp.mean(conv, axis=(0, 2, 3), keepdims=True)
    var = jnp.mean((conv - mean) ** 2, axis=(0, 2, 3), keepdims=True)
    y = (conv - mean) / jnp.sqrt(var + eps) * gamma.reshape(1, -1, 1, 1) \
        + beta.reshape(1, -1, 1, 1)
    return jnp.maximum(y, 0.0)


if __name__ == "__main__":
    key = jax.random.PRNGKey(0)
    kx, kw, kb = jax.random.split(key, 3)

    N, Cin, H, W = 2, 4, 16, 16
    Cout, KH, KW = 8, 3, 3

    x = jax.random.normal(kx, (N, Cin, H, W), dtype=jnp.float32)
    fan_in = Cin * KH * KW
    conv_w = jax.random.normal(kw, (Cout, Cin, KH, KW), dtype=jnp.float32) / jnp.sqrt(fan_in)
    conv_b = jax.random.normal(kb, (Cout,), dtype=jnp.float32) * 0.1
    bn_gamma = jnp.ones((Cout,), dtype=jnp.float32)   # PyTorch BatchNorm2d default init
    bn_beta = jnp.zeros((Cout,), dtype=jnp.float32)

    out = batch_norm_conv2d(x, conv_w, conv_b, bn_gamma, bn_beta, padding=1)
    out = jax.block_until_ready(out)

    ref = _reference(x, conv_w, conv_b, bn_gamma, bn_beta, padding=1)
    assert out.shape == (N, Cout, H, W), out.shape
    # Intentional precision tradeoff: bf16 MXU operands and a bf16 conv
    # intermediate (BN stats + epilogue in f32) vs an f32 HIGHEST reference.
    assert jnp.allclose(out, ref, atol=3e-2, rtol=3e-2), \
        float(jnp.max(jnp.abs(out - ref)))

    print("KERNEL_OK")
</pallas_src>

<mosaic_0001>
module attributes {stable_mosaic.version = 11 : i64} {
  func.func @conv_stats_kernel(%arg0: i32, %arg1: memref<2x16x64xbf16, #tpu.memory_space<vmem>>, %arg2: memref<3x64x128xbf16, #tpu.memory_space<vmem>>, %arg3: memref<2x16x128xbf16, #tpu.memory_space<vmem>>, %arg4: memref<1x2x128xf32, #tpu.memory_space<vmem>>, %arg5: memref<36x64xbf16, #tpu.memory_space<vmem>>) attributes {dimension_semantics = [#tpu.dimension_semantics<parallel>], iteration_bounds = array<i64: 1>, scalar_prefetch = 0 : i64, scratch_operands = 1 : i64, tpu.core_type = #tpu.core_type<tc>, window_params = [{transform_indices = @transform_0, window_bounds = array<i64: 2, 16, 64>}, {pipeline_mode = #tpu.pipeline_mode<synchronous>, transform_indices = @transform_1, window_bounds = array<i64: 3, 64, 128>}, {transform_indices = @transform_2, window_bounds = array<i64: 2, 16, 128>}, {transform_indices = @transform_3, window_bounds = array<i64: 1, 2, 128>}]} {
    %cst = arith.constant 0.000000e+00 : bf16
    %0 = vector.broadcast %cst : bf16 to vector<36x64xbf16>
    %c0 = arith.constant 0 : index
    %c0_0 = arith.constant 0 : index
    %1 = vector.load %arg5[%c0, %c0_0] : memref<36x64xbf16, #tpu.memory_space<vmem>>, vector<36x64xbf16>
    tpu.vector_store %arg5[%c0, %c0_0], %0 {strides = array<i32>} : memref<36x64xbf16, #tpu.memory_space<vmem>>, vector<36x64xbf16>,
    %c0_1 = arith.constant 0 : index
    %c0_2 = arith.constant 0 : index
    %c0_3 = arith.constant 0 : index
    %2 = vector.load %arg1[%c0_1, %c0_2, %c0_3] : memref<2x16x64xbf16, #tpu.memory_space<vmem>>, vector<1x16x64xbf16>
    %3 = vector.shape_cast %2 : vector<1x16x64xbf16> to vector<16x64xbf16>
    %c1 = arith.constant 1 : index
    %c0_4 = arith.constant 0 : index
    %4 = vector.load %arg5[%c1, %c0_4] : memref<36x64xbf16, #tpu.memory_space<vmem>>, vector<16x64xbf16>
    tpu.vector_store %arg5[%c1, %c0_4], %3 {strides = array<i32>} : memref<36x64xbf16, #tpu.memory_space<vmem>>, vector<16x64xbf16>,
    %c1_5 = arith.constant 1 : index
    %c0_6 = arith.constant 0 : index
    %c0_7 = arith.constant 0 : index
    %5 = vector.load %arg1[%c1_5, %c0_6, %c0_7] : memref<2x16x64xbf16, #tpu.memory_space<vmem>>, vector<1x16x64xbf16>
    %6 = vector.shape_cast %5 : vector<1x16x64xbf16> to vector<16x64xbf16>
    %c19 = arith.constant 19 : index
    %c0_8 = arith.constant 0 : index
    %7 = vector.load %arg5[%c19, %c0_8] : memref<36x64xbf16, #tpu.memory_space<vmem>>, vector<16x64xbf16>
    tpu.vector_store %arg5[%c19, %c0_8], %6 {strides = array<i32>} : memref<36x64xbf16, #tpu.memory_space<vmem>>, vector<16x64xbf16>,
    %cst_9 = arith.constant 0.000000e+00 : f32
    %8 = vector.broadcast %cst_9 : f32 to vector<34x128xf32>
    %c0_10 = arith.constant 0 : index
    %c0_11 = arith.constant 0 : index
    %9 = vector.load %arg5[%c0_10, %c0_11] : memref<36x64xbf16, #tpu.memory_space<vmem>>, vector<34x64xbf16>
    %c0_12 = arith.constant 0 : index
    %c0_13 = arith.constant 0 : index
    %c0_14 = arith.constant 0 : index
    %10 = vector.load %arg2[%c0_12, %c0_13, %c0_14] : memref<3x64x128xbf16, #tpu.memory_space<vmem>>, vector<1x64x128xbf16>
    %11 = vector.shape_cast %10 : vector<1x64x128xbf16> to vector<64x128xbf16>
    %cst_15 = arith.constant dense<0.000000e+00> : vector<34x128xf32>
    %12 = tpu.matmul %9, %11, %cst_15 {dimension_numbers = #tpu.dot_dimension_numbers<[1], [0], [0], [1], [0, 0, 1, 1], [], []>} : vector<34x64xbf16>, vector<64x128xbf16>, vector<34x128xf32> -> vector<34x128xf32>
    %13 = arith.addf %8, %12 : vector<34x128xf32>
    %c1_16 = arith.constant 1 : index
    %c0_17 = arith.constant 0 : index
    %14 = vector.load %arg5[%c1_16, %c0_17] : memref<36x64xbf16, #tpu.memory_space<vmem>>, vector<34x64xbf16>
    %c1_18 = arith.constant 1 : index
    %c0_19 = arith.constant 0 : index
    %c0_20 = arith.constant 0 : index
    %15 = vector.load %arg2[%c1_18, %c0_19, %c0_20] : memref<3x64x128xbf16, #tpu.memory_space<vmem>>, vector<1x64x128xbf16>
    %16 = vector.shape_cast %15 : vector<1x64x128xbf16> to vector<64x128xbf16>
    %cst_21 = arith.constant dense<0.000000e+00> : vector<34x128xf32>
    %17 = tpu.matmul %14, %16, %cst_21 {dimension_numbers = #tpu.dot_dimension_numbers<[1], [0], [0], [1], [0, 0, 1, 1], [], []>} : vector<34x64xbf16>, vector<64x128xbf16>, vector<34x128xf32> -> vector<34x128xf32>
    %18 = arith.addf %13, %17 : vector<34x128xf32>
    %c2 = arith.constant 2 : index
    %c0_22 = arith.constant 0 : index
    %19 = vector.load %arg5[%c2, %c0_22] : memref<36x64xbf16, #tpu.memory_space<vmem>>, vector<34x64xbf16>
    %c2_23 = arith.constant 2 : index
    %c0_24 = arith.constant 0 : index
    %c0_25 = arith.constant 0 : index
    %20 = vector.load %arg2[%c2_23, %c0_24, %c0_25] : memref<3x64x128xbf16, #tpu.memory_space<vmem>>, vector<1x64x128xbf16>
    %21 = vector.shape_cast %20 : vector<1x64x128xbf16> to vector<64x128xbf16>
    %cst_26 = arith.constant dense<0.000000e+00> : vector<34x128xf32>
    %22 = tpu.matmul %19, %21, %cst_26 {dimension_numbers = #tpu.dot_dimension_numbers<[1], [0], [0], [1], [0, 0, 1, 1], [], []>} : vector<34x64xbf16>, vector<64x128xbf16>, vector<34x128xf32> -> vector<34x128xf32>
    %23 = arith.addf %18, %22 : vector<34x128xf32>
    %cst_27 = arith.constant 0.000000e+00 : f32
    %24 = vector.broadcast %cst_27 : f32 to vector<1x128xf32>
    %cst_28 = arith.constant 0.000000e+00 : f32
    %25 = vector.broadcast %cst_28 : f32 to vector<1x128xf32>
    %26 = vector.extract_strided_slice %23 {offsets = [0, 0], sizes = [16, 128], strides = [1, 1]} : vector<34x128xf32> to vector<16x128xf32>
    %27 = arith.truncf %26 : vector<16x128xf32> to vector<16x128xbf16>
    %c0_29 = arith.constant 0 : index
    %c0_30 = arith.constant 0 : index
    %c0_31 = arith.constant 0 : index
    %28 = vector.load %arg3[%c0_29, %c0_30, %c0_31] : memref<2x16x128xbf16, #tpu.memory_space<vmem>>, vector<1x16x128xbf16>
    %29 = vector.shape_cast %28 : vector<1x16x128xbf16> to vector<16x128xbf16>
    %30 = vector.shape_cast %27 : vector<16x128xbf16> to vector<1x16x128xbf16>
    tpu.vector_store %arg3[%c0_29, %c0_30, %c0_31], %30 {strides = array<i32>} : memref<2x16x128xbf16, #tpu.memory_space<vmem>>, vector<1x16x128xbf16>,
    %cst_32 = arith.constant dense<0.000000e+00> : vector<128xf32>
    %31 = vector.multi_reduction <add>, %26, %cst_32 [0] : vector<16x128xf32> to vector<128xf32>
    %32 = vector.shape_cast %31 : vector<128xf32> to vector<1x128xf32>
    %33 = arith.addf %24, %32 : vector<1x128xf32>
    %34 = arith.mulf %26, %26 : vector<16x128xf32>
    %cst_33 = arith.constant dense<0.000000e+00> : vector<128xf32>
    %35 = vector.multi_reduction <add>, %34, %cst_33 [0] : vector<16x128xf32> to vector<128xf32>
    %36 = vector.shape_cast %35 : vector<128xf32> to vector<1x128xf32>
    %37 = arith.addf %25, %36 : vector<1x128xf32>
    %38 = vector.extract_strided_slice %23 {offsets = [18, 0], sizes = [16, 128], strides = [1, 1]} : vector<34x128xf32> to vector<16x128xf32>
    %39 = arith.truncf %38 : vector<16x128xf32> to vector<16x128xbf16>
    %c1_34 = arith.constant 1 : index
    %c0_35 = arith.constant 0 : index
    %c0_36 = arith.constant 0 : index
    %40 = vector.load %arg3[%c1_34, %c0_35, %c0_36] : memref<2x16x128xbf16, #tpu.memory_space<vmem>>, vector<1x16x128xbf16>
    %41 = vector.shape_cast %40 : vector<1x16x128xbf16> to vector<16x128xbf16>
    %42 = vector.shape_cast %39 : vector<16x128xbf16> to vector<1x16x128xbf16>
    tpu.vector_store %arg3[%c1_34, %c0_35, %c0_36], %42 {strides = array<i32>} : memref<2x16x128xbf16, #tpu.memory_space<vmem>>, vector<1x16x128xbf16>,
    %cst_37 = arith.constant dense<0.000000e+00> : vector<128xf32>
    %43 = vector.multi_reduction <add>, %38, %cst_37 [0] : vector<16x128xf32> to vector<128xf32>
    %44 = vector.shape_cast %43 : vector<128xf32> to vector<1x128xf32>
    %45 = arith.addf %33, %44 : vector<1x128xf32>
    %46 = arith.mulf %38, %38 : vector<16x128xf32>
    %cst_38 = arith.constant dense<0.000000e+00> : vector<128xf32>
    %47 = vector.multi_reduction <add>, %46, %cst_38 [0] : vector<16x128xf32> to vector<128xf32>
    %48 = vector.shape_cast %47 : vector<128xf32> to vector<1x128xf32>
    %49 = arith.addf %37, %48 : vector<1x128xf32>
    %50 = tpu.concatenate %45, %49 in 0 : vector<1x128xf32>, vector<1x128xf32> -> vector<2x128xf32>
    %c0_39 = arith.constant 0 : index
    %c0_40 = arith.constant 0 : index
    %c0_41 = arith.constant 0 : index
    %51 = vector.load %arg4[%c0_39, %c0_40, %c0_41] : memref<1x2x128xf32, #tpu.memory_space<vmem>>, vector<1x2x128xf32>
    %52 = vector.shape_cast %51 : vector<1x2x128xf32> to vector<2x128xf32>
    %53 = vector.shape_cast %50 : vector<2x128xf32> to vector<1x2x128xf32>
    tpu.vector_store %arg4[%c0_39, %c0_40, %c0_41], %53 {strides = array<i32>} : memref<1x2x128xf32, #tpu.memory_space<vmem>>, vector<1x2x128xf32>,
    return
  }
  func.func @transform_0(%arg0: i32) -> (i32, i32, i32) {
    %c0_i32 = arith.constant 0 : i32
    %c0_i32_0 = arith.constant 0 : i32
    %c0_i32_1 = arith.constant 0 : i32
    return %arg0, %c0_i32, %c0_i32_0 : i32, i32, i32
  }
  func.func @transform_1(%arg0: i32) -> (i32, i32, i32) {
    %c0_i32 = arith.constant 0 : i32
    %c0_i32_0 = arith.constant 0 : i32
    %c0_i32_1 = arith.constant 0 : i32
    %c0_i32_2 = arith.constant 0 : i32
    return %c0_i32, %c0_i32_0, %c0_i32_1 : i32, i32, i32
  }
  func.func @transform_2(%arg0: i32) -> (i32, i32, i32) {
    %c0_i32 = arith.constant 0 : i32
    %c0_i32_0 = arith.constant 0 : i32
    %c0_i32_1 = arith.constant 0 : i32
    return %arg0, %c0_i32, %c0_i32_0 : i32, i32, i32
  }
  func.func @transform_3(%arg0: i32) -> (i32, i32, i32) {
    %c0_i32 = arith.constant 0 : i32
    %c0_i32_0 = arith.constant 0 : i32
    %c0_i32_1 = arith.constant 0 : i32
    return %arg0, %c0_i32, %c0_i32_0 : i32, i32, i32
  }
}

</mosaic_0001>

<llo_original>
// kernel: tpu_custom_call.1
$region0: #{tpu_custom_call.1}
  #allocation0 [shape = 'u32[]', space=smem, size = 0x4, offset = 0x4, fixed_abs, tag = 'smem constant byte address 0x4 - core index']
  #allocation1 [shape = 'u32[144,128]{1,0:T(1,128)}', space=vmem, size = 0x12000, scoped, tag = 'internal scratch']
  #allocation2 [shape = 'bf16[36,64]{1,0:T(8,128)(2,1)}', space=vmem, size = 0x2800, scoped, tag = 'scratch operand']
  %s0 = inlined_call_operand.hbm [shape: bf16[2,16,64], index: 0, kind: input, shape index: {}]
  %s1 = inlined_call_operand.hbm [shape: bf16[3,64,128], index: 1, kind: input, shape index: {}]
  %s2 = inlined_call_operand.hbm [shape: bf16[2,16,128], index: 2, kind: output, shape index: {0}]
  %s3 = inlined_call_operand.hbm [shape: f32[1,2,128], index: 3, kind: output, shape index: {1}]
  %4 = xla_tuple %s2, %s3
  %s5 = sld [smem:[#allocation0]]
  $region34: #{tpu_custom_call.1} parent=0
    _
  %s7 = ssub.s32 1, %s5
  %s8 = scalar_select 0, %s7, %s5
  $region1: #{tpu_custom_call.1} parent=0
    #allocation3 [shape = 'u8[8192]{0}', space=vmem, size = 0x2000, scoped, tag = 'input window, operand 0, single buffered']
    #allocation4 [shape = 's32[1]{0}', space=sflag, size = 0x4, scoped, tag = 'scoped memory for tpu_custom_call.1']
    #allocation5 [shape = 's32[1]{0}', space=sflag, size = 0x4, scoped, tag = 'scoped memory for tpu_custom_call.1']
    #allocation6 [shape = 'u8[49152]{0}', space=vmem, size = 0xc000, scoped, tag = 'input window, operand 1, single buffered']
    #allocation7 [shape = 's32[1]{0}', space=sflag, size = 0x4, scoped, tag = 'scoped memory for tpu_custom_call.1']
    #allocation8 [shape = 'u8[8192]{0}', space=vmem, size = 0x2000, scoped, tag = 'output window, operand 0, single buffered']
    #allocation9 [shape = 'u8[1024]{0}', space=vmem, size = 0x400, scoped, tag = 'output window, operand 1, single buffered']
    #allocation10 [shape = 's32[1]{0}', space=sflag, size = 0x4, scoped, tag = 'scoped memory for tpu_custom_call.1']
    %9 = vsyncpa [#allocation4], 0
    %10 = vsyncpa [#allocation7], 0
    %11 = vsyncpa [#allocation5], 0
    %12 = vsyncpa [#allocation10], 0
    // Predicated region
    $region2: #{tpu_custom_call.1} parent=1 // pred_check
      _
    $region3: #{tpu_custom_call.1} parent=1 // pred_check_branch
      %14 = sbr.rel (0) target = $region5
    $region4: #{tpu_custom_call.1} parent=1 // pred_region
      %s16 = ssub.s32 256, 256
      %17 = vsyncadd [#allocation4], %s16
      %s18 = sshll.u32 [#allocation3], 4
      %s19 = int_to_ptr.vmem [resolvable:$true] %s18
      %24 = dma.hbm_to_vmem [thread:$0]  %s0, 256, %s19, [#allocation4], 64, 64, 4
    $region5: #{tpu_custom_call.1} parent=1 // pred_fallthru
      _
    // Predicated region
    $region6: #{tpu_custom_call.1} parent=1 // pred_check
      _
    $region7: #{tpu_custom_call.1} parent=1 // pred_check_branch
      %26 = sbr.rel (0) target = $region9
    $region8: #{tpu_custom_call.1} parent=1 // pred_region
      %s28 = ssub.s32 1536, 1536
      %29 = vsyncadd [#allocation7], %s28
      %s30 = sshll.u32 [#allocation6], 4
      %s31 = int_to_ptr.vmem [resolvable:$true] %s30
      %36 = dma.hbm_to_vmem [thread:$0]  %s1, 1536, %s31, [#allocation7], 64, 64, 4
    $region9: #{tpu_custom_call.1} parent=1 // pred_fallthru
      _
    // Predicated region
    $region10: #{tpu_custom_call.1} parent=1 // pred_check
      _
    $region11: #{tpu_custom_call.1} parent=1 // pred_check_branch
      %38 = sbr.rel (0) target = $region13
    $region12: #{tpu_custom_call.1} parent=1 // pred_region
      %39 = dma.done [#allocation4], 256
    $region13: #{tpu_custom_call.1} parent=1 // pred_fallthru
      _
    // Predicated region
    $region14: #{tpu_custom_call.1} parent=1 // pred_check
      _
    $region15: #{tpu_custom_call.1} parent=1 // pred_check_branch
      %41 = sbr.rel (0) target = $region17
    $region16: #{tpu_custom_call.1} parent=1 // pred_region
      %42 = dma.done [#allocation7], 1536
    $region17: #{tpu_custom_call.1} parent=1 // pred_fallthru
      _
    %vm44 = vcmask 519168
    %45 = vst.msk [vmem:[#allocation2] sm:$0xf] %vm44, 0
    %46 = vst.msk [vmem:[#allocation2 + $0x4] sm:$0xf] %vm44, 0
    %47 = vst.msk [vmem:[#allocation2 + $0x8] sm:$0xf] %vm44, 0
    %48 = vst.msk [vmem:[#allocation2 + $0xc] sm:$0xf] %vm44, 0
    %vm49 = vcmask 517120
    %50 = vst.msk [vmem:[#allocation2 + $0x10] sm:$0x3] %vm49, 0
    %v51 = vld [vmem:[#allocation3] sm:$0xf]
    %v52 = vld [vmem:[#allocation3 + $0x4] sm:$0xf]
    %vm53 = vsmask.f32 256
    %vm54 = vsmask.f32 4368
    %vm55 = vmor %vm53, %vm54
    %v57 = vshrl.u32 %v51, 16
    %v59 = vrot.slane %v57, 7
    %v60 = vshll.u32 %v51, 16
    %v62 = vor.u32 %v59, %v60
    %v63 = vrot.slane %v59, 4
    %v65 = vshrl.u32 %v52, 16
    %v67 = vrot.slane %v65, 7
    %v68 = vshll.u32 %v52, 16
    %v70 = vor.u32 %v67, %v68
    %v71 = vsel %vm55, %v63, %v70
    %v72 = vrot.slane %v67, 4
    %vm76 = vcmask 519168
    %vm77 = vsmask.f32 7938
    %vm78 = vmand %vm76, %vm77
    %v79 = vld [vmem:[#allocation2] sm:$0xf]
    %v80 = vsel %vm78, %v62, %v79
    %81 = vst [vmem:[#allocation2] sm:$0xf] %v80
    %82 = vst.msk [vmem:[#allocation2 + $0x4] sm:$0xf] %vm44, %v71
    %vm83 = vcmask 516096
    %vm84 = vmand %vm83, %vm53
    %v85 = vld [vmem:[#allocation2 + $0x8] sm:$0x1]
    %v86 = vsel %vm84, %v72, %v85
    %87 = vst [vmem:[#allocation2 + $0x8] sm:$0x1] %v86
    %s88 = scalar_lea.vmem [#allocation3], 8
    %v89 = vld [vmem:[%s88] sm:$0xf]
    %v90 = vld [vmem:[%s88 + $0x4] sm:$0xf]
    %vm91 = vsmask.f32 1280
    %vm92 = vsmask.f32 5392
    %vm93 = vmor %vm91, %vm92
    %v95 = vshrl.u32 %v89, 16
    %v97 = vrot.slane %v95, 6
    %v98 = vshll.u32 %v89, 16
    %v100 = vrot.slane %v98, 7
    %v101 = vor.u32 %v97, %v100
    %v102 = vrot.slane %v101, 4
    %v104 = vshrl.u32 %v90, 16
    %v106 = vrot.slane %v104, 6
    %v107 = vshll.u32 %v90, 16
    %v109 = vrot.slane %v107, 7
    %v110 = vor.u32 %v106, %v109
    %v111 = vsel %vm93, %v102, %v110
    %v112 = vrot.slane %v110, 4
    %vm116 = vcmask 519169
    %vm117 = vsmask.f32 7942
    %vm118 = vmand %vm116, %vm117
    %v119 = vld [vmem:[#allocation2 + $0x8] sm:$0xe]
    %v120 = vsel %vm118, %v101, %v119
    %121 = vst [vmem:[#allocation2 + $0x8] sm:$0xe] %v120
    %122 = vst.msk [vmem:[#allocation2 + $0xc] sm:$0xf] %vm44, %v111
    %vm123 = vcmask 517120
    %vm124 = vmand %vm123, %vm91
    %v125 = vld [vmem:[#allocation2 + $0x10] sm:$0x3]
    %v126 = vsel %vm124, %v112, %v125
    %127 = vst [vmem:[#allocation2 + $0x10] sm:$0x3] %v126
    %v128 = vld [vmem:[#allocation2] sm:$0xf]
    %v129 = vld [vmem:[#allocation2 + $0x4] sm:$0xf]
    %v130 = vld [vmem:[#allocation2 + $0x8] sm:$0xf]
    %v131 = vld [vmem:[#allocation2 + $0xc] sm:$0xf]
    %v132 = vld [vmem:[#allocation2 + $0x10] sm:$0x1]
    %v133 = vld [vmem:[#allocation6] sm:$0xf]
    %v134 = vld [vmem:[#allocation6 + $0x4] sm:$0xf]
    %v135 = vld [vmem:[#allocation6 + $0x8] sm:$0xf]
    %v136 = vld [vmem:[#allocation6 + $0xc] sm:$0xf]
    %v137 = vld [vmem:[#allocation6 + $0x10] sm:$0xf]
    %v138 = vld [vmem:[#allocation6 + $0x14] sm:$0xf]
    %v139 = vld [vmem:[#allocation6 + $0x18] sm:$0xf]
    %v140 = vld [vmem:[#allocation6 + $0x1c] sm:$0xf]
    %v141 = vld [vmem:[#allocation2 + $0x10] sm:$0x3]
    %s142 = scalar_lea.vmem [#allocation6], 32
    %v143 = vld [vmem:[%s142] sm:$0xf]
    %v144 = vld [vmem:[%s142 + $0x4] sm:$0xf]
    %v145 = vld [vmem:[%s142 + $0x8] sm:$0xf]
    %v146 = vld [vmem:[%s142 + $0xc] sm:$0xf]
    %v147 = vld [vmem:[%s142 + $0x10] sm:$0xf]
    %v148 = vld [vmem:[%s142 + $0x14] sm:$0xf]
    %v149 = vld [vmem:[%s142 + $0x18] sm:$0xf]
    %v150 = vld [vmem:[%s142 + $0x1c] sm:$0xf]
    %v156 = vunpack.c.l.b16 %v128
    %v157 = vunpack.c.l.b16 %v129
    %v158 = vunpack.c.l.b16 %v130
    %v159 = vunpack.c.l.b16 %v131
    %v160 = vunpack.c.l.b16 %v141
    %v161 = vpack.c.b16 %v157, %v156
    %v162 = vpack.c.b16 %v159, %v158
    %v163 = vpack.c.b16 %v160, %v160
    %vm164 = vsmask.f32 7424
    %v166 = vshrl.u32 %v161, 16
    %v168 = vshll.u32 %v161, 16
    %v170 = vrot.slane %v168, 1
    %v171 = vor.u32 %v166, %v170
    %v173 = vshll.u32 %v162, 16
    %v175 = vrot.slane %v173, 1
    %v176 = vsel %vm164, %v171, %v175
    %v177 = vshrl.u32 %v162, 16
    %v179 = vor.u32 %v177, %v175
    %v181 = vshll.u32 %v163, 16
    %v183 = vrot.slane %v181, 1
    %v184 = vsel %vm164, %v179, %v183
    %v185 = vshrl.u32 %v163, 16
    %v187 = vor.u32 %v185, %v183
    %v196 = vunpack.c.l.b16 %v143
    %v197 = vunpack.c.l.b16 %v144
    %v198 = vunpack.c.l.b16 %v145
    %v199 = vunpack.c.l.b16 %v146
    %v200 = vunpack.c.l.b16 %v147
    %v201 = vunpack.c.l.b16 %v148
    %v202 = vunpack.c.l.b16 %v149
    %v203 = vunpack.c.l.b16 %v150
    %v204 = vpack.c.b16 %v197, %v196
    %v205 = vpack.c.b16 %v199, %v198
    %v206 = vpack.c.b16 %v201, %v200
    %v207 = vpack.c.b16 %v203, %v202
    %vm212 = vcmask 523264
    %v214 = vsel %vm212, %v176, 0
    %v217 = vsel %vm212, %v184, 0
    %v220 = vsel %vm212, %v187, 0
    %222 = vmatprep.subr.bf16.mxu0 0
    %223 = vmatpush1.bf16.msra.mxu0 0
    %224 = vmatprep.subr.bf16.mxu0 0
    %225 = vmatpush1.bf16.msra.mxu0 0
    %226 = vmatprep.subr.bf16.mxu0 0
    %227 = vmatpush1.bf16.msra.mxu0 0
    %228 = vmatprep.subr.bf16.mxu0 0
    %229 = vmatpush1.bf16.msra.mxu0 0
    %230 = vmatprep.subr.bf16.mxu0 0
    %231 = vmatpush1.bf16.msra.mxu0 %v207
    %232 = vmatprep.subr.bf16.mxu0 0
    %233 = vmatpush1.bf16.msra.mxu0 %v206
    %234 = vmatprep.subr.bf16.mxu0 0
    %235 = vmatpush1.bf16.msra.mxu0 %v205
    %236 = vmatprep.subr.bf16.mxu0 0
    %237 = vmatpush1.bf16.msra.mxu0 %v204
    %238 = vmatprep.subr.bf16.mxu0 0
    %239 = vmatpush2.bf16.msra.mxu0 0
    %240 = vmatprep.subr.bf16.mxu0 0
    %241 = vmatpush2.bf16.msra.mxu0 0
    %242 = vmatprep.subr.bf16.mxu0 0
    %243 = vmatpush2.bf16.msra.mxu0 0
    %244 = vmatprep.subr.bf16.mxu0 0
    %245 = vmatpush2.bf16.msra.mxu0 0
    %246 = vmatprep.subr.bf16.mxu0 0
    %247 = vmatpush2.bf16.msra.mxu0 0
    %248 = vmatprep.subr.bf16.mxu0 0
    %249 = vmatpush2.bf16.msra.mxu0 0
    %250 = vmatprep.subr.bf16.mxu0 0
    %251 = vmatpush2.bf16.msra.mxu0 0
    %252 = vmatprep.subr.bf16.mxu0 0
    %253 = vmatpush2.bf16.msra.mxu0 0
    %254 = vmatprep.mubr.bf16.mxu0 0
    %255 = vmatmul.mubr.bf16.gmra.mxu0 %v214
    %v256 = vpop.f32.mrf.mxu0
    %v257 = vadd.f32 0.0, %v256
    %v258 = vpop.f32.mrf.mxu0
    %v259 = vpop.f32.mrf.mxu0
    %v260 = vadd.f32 0.0, %v259
    %v261 = vpop.f32.mrf.mxu0
    %262 = vmatprep.mubr.bf16.mxu0 0
    %263 = vmatmul.mubr.bf16.gmra.mxu0 %v217
    %v264 = vpop.f32.mrf.mxu0
    %v265 = vadd.f32 0.0, %v264
    %v266 = vpop.f32.mrf.mxu0
    %v267 = vpop.f32.mrf.mxu0
    %v268 = vadd.f32 0.0, %v267
    %v269 = vpop.f32.mrf.mxu0
    %270 = vmatprep.mubr.bf16.mxu0 0
    %271 = vmatmul.mubr.bf16.gmra.mxu0 %v220
    %v272 = vpop.f32.mrf.mxu0
    %v273 = vadd.f32 0.0, %v272
    %v274 = vpop.f32.mrf.mxu0
    %v275 = vpop.f32.mrf.mxu0
    %v276 = vpop.f32.mrf.mxu0
    %277 = vdwg.mxu0
    %v279 = vunpack.c.l.b16 %v132
    %v280 = vpack.c.b16 %v279, %v279
    %v289 = vunpack.c.l.b16 %v133
    %v290 = vunpack.c.l.b16 %v134
    %v291 = vunpack.c.l.b16 %v135
    %v292 = vunpack.c.l.b16 %v136
    %v293 = vunpack.c.l.b16 %v137
    %v294 = vunpack.c.l.b16 %v138
    %v295 = vunpack.c.l.b16 %v139
    %v296 = vunpack.c.l.b16 %v140
    %v297 = vpack.c.b16 %v290, %v289
    %v298 = vpack.c.b16 %v292, %v291
    %v299 = vpack.c.b16 %v294, %v293
    %v300 = vpack.c.b16 %v296, %v295
    %v305 = vsel %vm212, %v161, 0
    %v307 = vsel %vm212, %v162, 0
    %v310 = vsel %vm212, %v280, 0
    %312 = vmatprep.subr.bf16.mxu0 0
    %313 = vmatpush1.bf16.msra.mxu0 0
    %314 = vmatprep.subr.bf16.mxu0 0
    %315 = vmatpush1.bf16.msra.mxu0 0
    %316 = vmatprep.subr.bf16.mxu0 0
    %317 = vmatpush1.bf16.msra.mxu0 0
    %318 = vmatprep.subr.bf16.mxu0 0
    %319 = vmatpush1.bf16.msra.mxu0 0
    %320 = vmatprep.subr.bf16.mxu0 0
    %321 = vmatpush1.bf16.msra.mxu0 %v300
    %322 = vmatprep.subr.bf16.mxu0 0
    %323 = vmatpush1.bf16.msra.mxu0 %v299
    %324 = vmatprep.subr.bf16.mxu0 0
    %325 = vmatpush1.bf16.msra.mxu0 %v298
    %326 = vmatprep.subr.bf16.mxu0 0
    %327 = vmatpush1.bf16.msra.mxu0 %v297
    %328 = vmatprep.subr.bf16.mxu0 0
    %329 = vmatpush2.bf16.msra.mxu0 0
    %330 = vmatprep.subr.bf16.mxu0 0
    %331 = vmatpush2.bf16.msra.mxu0 0
    %332 = vmatprep.subr.bf16.mxu0 0
    %333 = vmatpush2.bf16.msra.mxu0 0
    %334 = vmatprep.subr.bf16.mxu0 0
    %335 = vmatpush2.bf16.msra.mxu0 0
    %336 = vmatprep.subr.bf16.mxu0 0
    %337 = vmatpush2.bf16.msra.mxu0 0
    %338 = vmatprep.subr.bf16.mxu0 0
    %339 = vmatpush2.bf16.msra.mxu0 0
    %340 = vmatprep.subr.bf16.mxu0 0
    %341 = vmatpush2.bf16.msra.mxu0 0
    %342 = vmatprep.subr.bf16.mxu0 0
    %343 = vmatpush2.bf16.msra.mxu0 0
    %344 = vmatprep.mubr.bf16.mxu0 0
    %345 = vmatmul.mubr.bf16.gmra.mxu0 %v305
    %v346 = vpop.f32.mrf.mxu0
    %v347 = vadd.f32 %v257, %v346
    %v348 = vpop.f32.mrf.mxu0
    %v349 = vpop.f32.mrf.mxu0
    %v350 = vadd.f32 %v260, %v349
    %v351 = vpop.f32.mrf.mxu0
    %352 = vmatprep.mubr.bf16.mxu0 0
    %353 = vmatmul.mubr.bf16.gmra.mxu0 %v307
    %v354 = vpop.f32.mrf.mxu0
    %v355 = vadd.f32 %v265, %v354
    %v356 = vpop.f32.mrf.mxu0
    %v357 = vpop.f32.mrf.mxu0
    %v358 = vadd.f32 %v268, %v357
    %v359 = vpop.f32.mrf.mxu0
    %360 = vmatprep.mubr.bf16.mxu0 0
    %361 = vmatmul.mubr.bf16.gmra.mxu0 %v310
    %v362 = vpop.f32.mrf.mxu0
    %v363 = vadd.f32 %v273, %v362
    %v364 = vpop.f32.mrf.mxu0
    %v365 = vpop.f32.mrf.mxu0
    %v366 = vpop.f32.mrf.mxu0
    %367 = vdwg.mxu0
    %v368 = vld [vmem:[#allocation2] sm:$0xe]
    %s369 = scalar_lea.vmem [#allocation6], 64
    %v370 = vld [vmem:[%s369] sm:$0xf]
    %v371 = vld [vmem:[%s369 + $0x4] sm:$0xf]
    %v372 = vld [vmem:[%s369 + $0x8] sm:$0xf]
    %v373 = vld [vmem:[%s369 + $0xc] sm:$0xf]
    %v374 = vld [vmem:[%s369 + $0x10] sm:$0xf]
    %v375 = vld [vmem:[%s369 + $0x14] sm:$0xf]
    %v376 = vld [vmem:[%s369 + $0x18] sm:$0xf]
    %v377 = vld [vmem:[%s369 + $0x1c] sm:$0xf]
    %v379 = vunpack.c.l.b16 %v368
    %v380 = vpack.c.b16 %v157, %v379
    %vm381 = vcmask 1046528
    %v382 = vrot.slane %v380, 1
    %v383 = vrot.slane %v162, 1
    %v384 = vsel %vm381, %v382, %v383
    %v385 = vrot.slane %v163, 1
    %v386 = vsel %vm381, %v383, %v385
    %v395 = vunpack.c.l.b16 %v370
    %v396 = vunpack.c.l.b16 %v371
    %v397 = vunpack.c.l.b16 %v372
    %v398 = vunpack.c.l.b16 %v373
    %v399 = vunpack.c.l.b16 %v374
    %v400 = vunpack.c.l.b16 %v375
    %v401 = vunpack.c.l.b16 %v376
    %v402 = vunpack.c.l.b16 %v377
    %v403 = vpack.c.b16 %v396, %v395
    %v404 = vpack.c.b16 %v398, %v397
    %v405 = vpack.c.b16 %v400, %v399
    %v406 = vpack.c.b16 %v402, %v401
    %v412 = vsel %vm212, %v384, 0
    %v415 = vsel %vm212, %v386, 0
    %v418 = vsel %vm212, %v385, 0
    %420 = vmatprep.subr.bf16.mxu0 0
    %421 = vmatpush1.bf16.msra.mxu0 0
    %422 = vmatprep.subr.bf16.mxu0 0
    %423 = vmatpush1.bf16.msra.mxu0 0
    %424 = vmatprep.subr.bf16.mxu0 0
    %425 = vmatpush1.bf16.msra.mxu0 0
    %426 = vmatprep.subr.bf16.mxu0 0
    %427 = vmatpush1.bf16.msra.mxu0 0
    %428 = vmatprep.subr.bf16.mxu0 0
    %429 = vmatpush1.bf16.msra.mxu0 %v406
    %430 = vmatprep.subr.bf16.mxu0 0
    %431 = vmatpush1.bf16.msra.mxu0 %v405
    %432 = vmatprep.subr.bf16.mxu0 0
    %433 = vmatpush1.bf16.msra.mxu0 %v404
    %434 = vmatprep.subr.bf16.mxu0 0
    %435 = vmatpush1.bf16.msra.mxu0 %v403
    %436 = vmatprep.subr.bf16.mxu0 0
    %437 = vmatpush2.bf16.msra.mxu0 0
    %438 = vmatprep.subr.bf16.mxu0 0
    %439 = vmatpush2.bf16.msra.mxu0 0
    %440 = vmatprep.subr.bf16.mxu0 0
    %441 = vmatpush2.bf16.msra.mxu0 0
    %442 = vmatprep.subr.bf16.mxu0 0
    %443 = vmatpush2.bf16.msra.mxu0 0
    %444 = vmatprep.subr.bf16.mxu0 0
    %445 = vmatpush2.bf16.msra.mxu0 0
    %446 = vmatprep.subr.bf16.mxu0 0
    %447 = vmatpush2.bf16.msra.mxu0 0
    %448 = vmatprep.subr.bf16.mxu0 0
    %449 = vmatpush2.bf16.msra.mxu0 0
    %450 = vmatprep.subr.bf16.mxu0 0
    %451 = vmatpush2.bf16.msra.mxu0 0
    %452 = vmatprep.mubr.bf16.mxu0 0
    %453 = vmatmul.mubr.bf16.gmra.mxu0 %v412
    %v454 = vpop.f32.mrf.mxu0
    %v455 = vadd.f32 0.0, %v454
    %v456 = vpop.f32.mrf.mxu0
    %v457 = vpop.f32.mrf.mxu0
    %v458 = vadd.f32 0.0, %v457
    %v459 = vpop.f32.mrf.mxu0
    %460 = vmatprep.mubr.bf16.mxu0 0
    %461 = vmatmul.mubr.bf16.gmra.mxu0 %v415
    %v462 = vpop.f32.mrf.mxu0
    %v463 = vadd.f32 0.0, %v462
    %v464 = vpop.f32.mrf.mxu0
    %v465 = vpop.f32.mrf.mxu0
    %v466 = vadd.f32 0.0, %v465
    %v467 = vpop.f32.mrf.mxu0
    %468 = vmatprep.mubr.bf16.mxu0 0
    %469 = vmatmul.mubr.bf16.gmra.mxu0 %v418
    %v470 = vpop.f32.mrf.mxu0
    %v471 = vadd.f32 0.0, %v470
    %v472 = vpop.f32.mrf.mxu0
    %v473 = vpop.f32.mrf.mxu0
    %v474 = vpop.f32.mrf.mxu0
    %475 = vdwg.mxu0
    %v476 = vadd.f32 %v347, %v455
    %v477 = vadd.f32 %v350, %v458
    %v478 = vadd.f32 %v355, %v463
    %v479 = vadd.f32 %v358, %v466
    %v480 = vadd.f32 %v363, %v471
    %v481 = vpack.c.bf16 %v477, %v476
    %v483 = vunpack.c.l.b16 %v481
    %v484 = vunpack.c.h.b16 %v481
    %v485 = vpack.c.b16 %v483, %v483
    %v486 = vpack.c.b16 %v484, %v484
    %489 = vst [vmem:[#allocation8] sm:$0xf] %v485
    %490 = vst [vmem:[#allocation8 + $0x4] sm:$0xf] %v486
    %v491 = vadd.f32 %v476, %v477
    %v492 = vrot.slane %v491, 4
    %v493 = vadd.f32 %v491, %v492
    %v494 = vrot.slane %v493, 2
    %v495 = vadd.f32 %v493, %v494
    %v496 = vrot.slane %v495, 1
    %v497 = vadd.f32 %v495, %v496
    %v498 = vadd.f32 %v497, 0.0
    %v499 = vmul.f32 %v476, %v476
    %v500 = vmul.f32 %v477, %v477
    %v501 = vadd.f32 %v499, %v500
    %v502 = vrot.slane %v501, 4
    %v503 = vadd.f32 %v501, %v502
    %v504 = vrot.slane %v503, 2
    %v505 = vadd.f32 %v503, %v504
    %v506 = vrot.slane %v505, 1
    %v507 = vadd.f32 %v505, %v506
    %v508 = vadd.f32 %v507, 0.0
    %v509 = vpack.c.bf16 %v479, %v478
    %v510 = vpack.c.bf16 %v480, %v480
    %v513 = vunpack.c.l.b16 %v509
    %v514 = vunpack.c.h.b16 %v509
    %v515 = vunpack.c.l.b16 %v510
    %v516 = vpack.c.b16 %v513, %v513
    %v517 = vpack.c.b16 %v514, %v514
    %v518 = vpack.c.b16 %v515, %v515
    %vm519 = vcmask 1042432
    %vm520 = vcmask 1046532
    %vm521 = vmor %vm519, %vm520
    %v522 = vrot.slane %v516, 5
    %v523 = vrot.slane %v522, 4
    %v524 = vrot.slane %v517, 5
    %v525 = vsel %vm521, %v523, %v524
    %v526 = vrot.slane %v524, 4
    %v527 = vrot.slane %v518, 5
    %v528 = vsel %vm521, %v526, %v527
    %s531 = scalar_lea.vmem [#allocation8], 8
    %532 = vst [vmem:[%s531] sm:$0xf] %v525
    %533 = vst [vmem:[%s531 + $0x4] sm:$0xf] %v528
    %vm537 = vcmask 1045504
    %v538 = vrot.slane %v478, 2
    %v539 = vrot.slane %v479, 2
    %v540 = vsel %vm537, %v538, %v539
    %v541 = vrot.slane %v480, 2
    %v542 = vsel %vm537, %v539, %v541
    %v545 = vadd.f32 %v540, %v542
    %v546 = vrot.slane %v545, 4
    %v547 = vadd.f32 %v545, %v546
    %v548 = vrot.slane %v547, 2
    %v549 = vadd.f32 %v547, %v548
    %v550 = vrot.slane %v549, 1
    %v551 = vadd.f32 %v549, %v550
    %v552 = vadd.f32 %v498, %v551
    %v553 = vmul.f32 %v478, %v478
    %v554 = vmul.f32 %v479, %v479
    %v555 = vmul.f32 %v480, %v480
    %v559 = vrot.slane %v553, 2
    %v560 = vrot.slane %v554, 2
    %v561 = vsel %vm537, %v559, %v560
    %v562 = vrot.slane %v555, 2
    %v563 = vsel %vm537, %v560, %v562
    %v566 = vadd.f32 %v561, %v563
    %v567 = vrot.slane %v566, 4
    %v568 = vadd.f32 %v566, %v567
    %v569 = vrot.slane %v568, 2
    %v570 = vadd.f32 %v568, %v569
    %v571 = vrot.slane %v570, 1
    %v572 = vadd.f32 %v570, %v571
    %v573 = vadd.f32 %v508, %v572
    %vm574 = vcmask 1040384
    %v575 = vsel %vm574, %v552, %v573
    %576 = vst [vmem:[#allocation9] sm:$0x3] %v575
    // Predicated region
    $region18: #{tpu_custom_call.1} parent=1 // pred_check
      _
    $region19: #{tpu_custom_call.1} parent=1 // pred_check_branch
      %578 = sbr.rel (0) target = $region21
    $region20: #{tpu_custom_call.1} parent=1 // pred_region
      %s580 = ssub.s32 256, 256
      %581 = vsyncadd [#allocation5], %s580
      %s582 = sshll.u32 [#allocation8], 4
      %s583 = int_to_ptr.vmem [resolvable:$true] %s582
      %588 = dma.vmem_to_hbm [thread:$0]  %s583, 256, %s2, [#allocation5], 64, 64, 4
    $region21: #{tpu_custom_call.1} parent=1 // pred_fallthru
      _
    // Predicated region
    $region22: #{tpu_custom_call.1} parent=1 // pred_check
      _
    $region23: #{tpu_custom_call.1} parent=1 // pred_check_branch
      %590 = sbr.rel (0) target = $region25
    $region24: #{tpu_custom_call.1} parent=1 // pred_region
      %s592 = ssub.s32 32, 32
      %593 = vsyncadd [#allocation10], %s592
      %s595 = sshll.u32 [#allocation9], 4
      %s596 = int_to_ptr.vmem [resolvable:$true] %s595
      %598 = dma.vmem_to_hbm [thread:$0]  %s596, 32, %s3, [#allocation10]
    $region25: #{tpu_custom_call.1} parent=1 // pred_fallthru
      _
    // Predicated region
    $region26: #{tpu_custom_call.1} parent=1 // pred_check
      _
    $region27: #{tpu_custom_call.1} parent=1 // pred_check_branch
      %600 = sbr.rel (0) target = $region29
    $region28: #{tpu_custom_call.1} parent=1 // pred_region
      %601 = dma.done [#allocation5], 256
    $region29: #{tpu_custom_call.1} parent=1 // pred_fallthru
      _
    // Predicated region
    $region30: #{tpu_custom_call.1} parent=1 // pred_check
      _
    $region31: #{tpu_custom_call.1} parent=1 // pred_check_branch
      %603 = sbr.rel (0) target = $region33
    $region32: #{tpu_custom_call.1} parent=1 // pred_region
      %604 = dma.done [#allocation10], 32
    $region33: #{tpu_custom_call.1} parent=1 // pred_fallthru
      _
    %605 = vsyncpa [#allocation4], 1
    %606 = vsyncpa [#allocation7], 1
    %607 = vsyncpa [#allocation5], 1
    %608 = vsyncpa [#allocation10], 1

</llo_original>
